<compile_context>
chip_gen: v5e
topology: v5e:2x2
jax: 0.10.0
libtpu: 0.0.40
codegen_flags: <defaults>
</compile_context>

<pallas_src>
import functools

import jax
import jax.numpy as jnp
from jax import lax
from jax.experimental import pallas as pl
from jax.experimental.pallas import tpu as pltpu
import numpy as np


def _row_tile(n):
    # TODO(synk): for production shapes size this toward the VMEM budget per
    # chip generation (bigger tiles -> closer to HBM roofline); 8 keeps several
    # grid steps for pipelining at the small demo shapes.
    return 8 if n % 8 == 0 else n


@functools.partial(jax.jit, static_argnames=("stride", "padding", "eps"))
def sparse_cnn_block_forward(x_nchw, mask_nchw, conv_w_oihw, gamma, beta,
                             *, stride=1, padding=1, eps=1e-5):
    """Pallas forward of SparseCNNBlock (training-mode BatchNorm).

    x_nchw:      [B, Cin, H, W] float32
    mask_nchw:   [B, 1, H, W]   float32 or None
    conv_w_oihw: [Cout, Cin, K, K]
    gamma, beta: [Cout]
    Returns (out_nchw, mask_nchw) like the torch module's (x, mask).
    """
    # TODO(synk): stride > 1 path (mask max-pool + nearest interpolate +
    # strided conv) is not implemented; the module default stride=1 is.
    assert stride == 1, "only stride=1 implemented"

    B, Cin, H, W = x_nchw.shape
    Cout, _, K, _ = conv_w_oihw.shape
    Hout = H + 2 * padding - K + 1
    Wout = W + 2 * padding - K + 1
    Hp, Wp = H + 2 * padding, W + 2 * padding
    WC = Wout * Cout          # lane-dense slab width (128 at demo shape)
    WPC = Wp * Cin            # per-row contraction width

    # ---- input: NCHW -> padded NHWC -> [B, Hp, Wp*Cin] slab (fused under jit)
    x = jnp.transpose(x_nchw, (0, 2, 3, 1)).astype(jnp.float32)
    x = jnp.pad(x, ((0, 0), (padding, padding), (padding, padding), (0, 0)))
    x_slab = x.reshape(B, Hp, WPC)

    # ---- banded ("width-unrolled") conv weight: (K, Wp*Cin, Wout*Cout)
    # band[kh, wp, ci, w, co] = conv_w[co, ci, kh, wp - w]  for 0 <= wp-w < K.
    # TODO(synk): for large Wout*Cout (production widths) switch to a
    # Cout-tiled im2col contraction instead of this width-unrolled weight.
    wt = jnp.transpose(conv_w_oihw, (2, 3, 1, 0)).astype(jnp.float32)  # (K,K,Cin,Cout)
    band = jnp.zeros((K, Wp, Cin, Wout, Cout), jnp.float32)
    for kw in range(K):
        sel = jnp.eye(Wout, Wp, k=kw, dtype=jnp.float32)   # sel[w, wp]=1 iff wp==w+kw
        band = band + (sel.T[None, :, None, :, None]
                       * wt[:, kw, :, :][:, None, :, None, :])
    w_band = band.reshape(K, WPC, WC)

    # ---- mask expanded to the slab layout (per-pixel value repeated Cout x)
    if mask_nchw is None:
        mask_slab = jnp.ones((B, Hout, WC), jnp.float32)
    else:
        m = jnp.transpose(mask_nchw, (0, 2, 3, 1)).astype(jnp.float32)  # (B,H,W,1)
        assert m.shape[1] == Hout and m.shape[2] == Wout
        mask_slab = jnp.broadcast_to(m, (B, Hout, Wout, Cout)).reshape(B, Hout, WC)

    TH = _row_tile(Hout)
    NHT = Hout // TH

    # ---------- kernel 1: conv + mask + per-tile BN partial stats ------------
    def conv_kernel(x_ref, w_ref, m_ref, y_ref, st_ref):
        ht = pl.program_id(1)
        row0 = pl.multiple_of(ht * TH, TH)
        # one aligned dynamic window load; the kh shifts are static value slices
        xb = x_ref[0, pl.ds(row0, TH + K - 1), :]            # (TH+K-1, Wp*Cin)
        acc = jnp.zeros((TH, WC), jnp.float32)
        for kh in range(K):                                  # K MXU matmuls, K-dim = Wp*Cin
            lhs = xb[kh:kh + TH, :]                          # (TH, Wp*Cin)
            acc = acc + jnp.dot(lhs, w_ref[kh],
                                preferred_element_type=jnp.float32)
        ym = acc * m_ref[0]                                  # masked conv, (TH, WC)
        y_ref[0] = ym                                        # lane-dense store
        st_ref[0, 0, 0:1, :] = jnp.sum(ym, axis=0, keepdims=True)
        st_ref[0, 0, 1:2, :] = jnp.sum(ym * ym, axis=0, keepdims=True)

    y, stats = pl.pallas_call(
        conv_kernel,
        out_shape=(jax.ShapeDtypeStruct((B, Hout, WC), jnp.float32),
                   jax.ShapeDtypeStruct((B, NHT, 2, WC), jnp.float32)),
        grid=(B, NHT),
        in_specs=[
            pl.BlockSpec((1, Hp, WPC), lambda b, ht: (b, 0, 0)),   # resident per batch
            pl.BlockSpec((K, WPC, WC), lambda b, ht: (0, 0, 0)),   # resident weights
            pl.BlockSpec((1, TH, WC), lambda b, ht: (b, ht, 0)),
        ],
        out_specs=(
            pl.BlockSpec((1, TH, WC), lambda b, ht: (b, ht, 0)),
            pl.BlockSpec((1, 1, 2, WC), lambda b, ht: (b, ht, 0, 0)),
        ),
        compiler_params=pltpu.CompilerParams(
            dimension_semantics=("parallel", "parallel"),
            vmem_limit_bytes=32 * 1024 * 1024),
    )(x_slab, w_band, mask_slab)

    # ---- tiny per-channel BN coefficient math (O(Cout) XLA glue) ------------
    # TODO(synk): E[y^2]-E[y]^2 is cancellation-prone for large-mean activations;
    # switch to a shifted/Welford accumulation if that regime matters.
    tot = jnp.sum(stats.reshape(B, NHT, 2, Wout, Cout), axis=(0, 1, 3))  # (2, Cout)
    n = float(B * Hout * Wout)
    mean = tot[0] / n
    var = jnp.maximum(tot[1] / n - mean * mean, 0.0)        # biased var (training BN)
    scale = gamma.astype(jnp.float32) / jnp.sqrt(var + eps)
    shift = beta.astype(jnp.float32) - mean * scale
    scale_row = jnp.tile(scale, Wout).reshape(1, WC)        # slab-tiled (1, WC)
    shift_row = jnp.tile(shift, Wout).reshape(1, WC)

    # ---------- kernel 2: BN affine + ReLU on the lane-dense slab ------------
    R = B * Hout
    TR = _row_tile(R)
    y2 = y.reshape(R, WC)                                   # free row-major reshape

    def bn_relu_kernel(y_ref, s_ref, t_ref, o_ref):
        o_ref[...] = jnp.maximum(y_ref[...] * s_ref[...] + t_ref[...], 0.0)

    z = pl.pallas_call(
        bn_relu_kernel,
        out_shape=jax.ShapeDtypeStruct((R, WC), jnp.float32),
        grid=(R // TR,),
        in_specs=[
            pl.BlockSpec((TR, WC), lambda i: (i, 0)),
            pl.BlockSpec((1, WC), lambda i: (0, 0)),
            pl.BlockSpec((1, WC), lambda i: (0, 0)),
        ],
        out_specs=pl.BlockSpec((TR, WC), lambda i: (i, 0)),
        compiler_params=pltpu.CompilerParams(
            dimension_semantics=("parallel",),
            vmem_limit_bytes=32 * 1024 * 1024),
    )(y2, scale_row, shift_row)

    out_nchw = jnp.transpose(z.reshape(B, Hout, Wout, Cout), (0, 3, 1, 2))
    return out_nchw, mask_nchw


def _ref_forward(x, mask, conv_w, gamma, beta, eps=1e-5):
    """Plain-JAX reference matching the torch module (training-mode BN)."""
    y = lax.conv_general_dilated(
        x, conv_w, window_strides=(1, 1), padding=((1, 1), (1, 1)),
        dimension_numbers=("NCHW", "OIHW", "NCHW"))
    if mask is not None:
        y = y * mask
    mean = jnp.mean(y, axis=(0, 2, 3), keepdims=True)
    var = jnp.mean((y - mean) ** 2, axis=(0, 2, 3), keepdims=True)
    yn = (y - mean) / jnp.sqrt(var + eps)
    yn = yn * gamma.reshape(1, -1, 1, 1) + beta.reshape(1, -1, 1, 1)
    return jnp.maximum(yn, 0.0)


if __name__ == "__main__":
    key = jax.random.PRNGKey(0)
    k1, k2, k3, k4, k5 = jax.random.split(key, 5)

    B, Cin, Cout, H, W = 2, 4, 8, 16, 16
    x = jax.random.normal(k1, (B, Cin, H, W), jnp.float32)
    mask = (jax.random.uniform(k2, (B, 1, H, W)) > 0.3).astype(jnp.float32)
    conv_w = 0.1 * jax.random.normal(k3, (Cout, Cin, 3, 3), jnp.float32)
    gamma = 1.0 + 0.1 * jax.random.normal(k4, (Cout,), jnp.float32)
    beta = 0.1 * jax.random.normal(k5, (Cout,), jnp.float32)

    out, mask_out = sparse_cnn_block_forward(x, mask, conv_w, gamma, beta)
    out = jax.block_until_ready(out)

    ref = _ref_forward(x, mask, conv_w, gamma, beta)
    assert out.shape == ref.shape == (B, Cout, H, W)
    np.testing.assert_allclose(np.asarray(out), np.asarray(ref), atol=2e-3, rtol=2e-3)

    print("KERNEL_OK")
</pallas_src>

<mosaic_0001>
module attributes {stable_mosaic.version = 11 : i64} {
  func.func @conv_kernel(%arg0: i32, %arg1: i32, %arg2: memref<1x18x72xf32, #tpu.memory_space<vmem>>, %arg3: memref<3x72x128xf32, #tpu.memory_space<vmem>>, %arg4: memref<1x8x128xf32, #tpu.memory_space<vmem>>, %arg5: memref<1x8x128xf32, #tpu.memory_space<vmem>>, %arg6: memref<1x1x2x128xf32, #tpu.memory_space<vmem>>) attributes {dimension_semantics = [#tpu.dimension_semantics<parallel>, #tpu.dimension_semantics<parallel>], iteration_bounds = array<i64: 2, 2>, scalar_prefetch = 0 : i64, scratch_operands = 0 : i64, tpu.core_type = #tpu.core_type<tc>, window_params = [{transform_indices = @transform_0, window_bounds = array<i64: 1, 18, 72>}, {pipeline_mode = #tpu.pipeline_mode<synchronous>, transform_indices = @transform_1, window_bounds = array<i64: 3, 72, 128>}, {transform_indices = @transform_2, window_bounds = array<i64: 1, 8, 128>}, {transform_indices = @transform_3, window_bounds = array<i64: 1, 8, 128>}, {transform_indices = @transform_4, window_bounds = array<i64: 1, 1, 2, 128>}]} {
    %c8_i32 = arith.constant 8 : i32
    %0 = arith.muli %arg1, %c8_i32 : i32
    %1 = tpu.assume_multiple %0, 8 : i32
    %c0 = arith.constant 0 : index
    %2 = arith.index_cast %1 : i32 to index
    %c0_0 = arith.constant 0 : index
    %3 = vector.load %arg2[%c0, %2, %c0_0] : memref<1x18x72xf32, #tpu.memory_space<vmem>>, vector<1x10x72xf32>
    %4 = vector.shape_cast %3 : vector<1x10x72xf32> to vector<10x72xf32>
    %cst = arith.constant 0.000000e+00 : f32
    %5 = vector.broadcast %cst : f32 to vector<8x128xf32>
    %6 = vector.extract_strided_slice %4 {offsets = [0, 0], sizes = [8, 72], strides = [1, 1]} : vector<10x72xf32> to vector<8x72xf32>
    %c0_1 = arith.constant 0 : index
    %c0_2 = arith.constant 0 : index
    %c0_3 = arith.constant 0 : index
    %7 = vector.load %arg3[%c0_1, %c0_2, %c0_3] : memref<3x72x128xf32, #tpu.memory_space<vmem>>, vector<1x72x128xf32>
    %8 = vector.shape_cast %7 : vector<1x72x128xf32> to vector<72x128xf32>
    %cst_4 = arith.constant dense<0.000000e+00> : vector<8x128xf32>
    %9 = tpu.matmul %6, %8, %cst_4 {dimension_numbers = #tpu.dot_dimension_numbers<[1], [0], [0], [1], [0, 0, 1, 1], [], []>} : vector<8x72xf32>, vector<72x128xf32>, vector<8x128xf32> -> vector<8x128xf32>
    %10 = arith.addf %5, %9 : vector<8x128xf32>
    %11 = vector.extract_strided_slice %4 {offsets = [1, 0], sizes = [8, 72], strides = [1, 1]} : vector<10x72xf32> to vector<8x72xf32>
    %c1 = arith.constant 1 : index
    %c0_5 = arith.constant 0 : index
    %c0_6 = arith.constant 0 : index
    %12 = vector.load %arg3[%c1, %c0_5, %c0_6] : memref<3x72x128xf32, #tpu.memory_space<vmem>>, vector<1x72x128xf32>
    %13 = vector.shape_cast %12 : vector<1x72x128xf32> to vector<72x128xf32>
    %cst_7 = arith.constant dense<0.000000e+00> : vector<8x128xf32>
    %14 = tpu.matmul %11, %13, %cst_7 {dimension_numbers = #tpu.dot_dimension_numbers<[1], [0], [0], [1], [0, 0, 1, 1], [], []>} : vector<8x72xf32>, vector<72x128xf32>, vector<8x128xf32> -> vector<8x128xf32>
    %15 = arith.addf %10, %14 : vector<8x128xf32>
    %16 = vector.extract_strided_slice %4 {offsets = [2, 0], sizes = [8, 72], strides = [1, 1]} : vector<10x72xf32> to vector<8x72xf32>
    %c2 = arith.constant 2 : index
    %c0_8 = arith.constant 0 : index
    %c0_9 = arith.constant 0 : index
    %17 = vector.load %arg3[%c2, %c0_8, %c0_9] : memref<3x72x128xf32, #tpu.memory_space<vmem>>, vector<1x72x128xf32>
    %18 = vector.shape_cast %17 : vector<1x72x128xf32> to vector<72x128xf32>
    %cst_10 = arith.constant dense<0.000000e+00> : vector<8x128xf32>
    %19 = tpu.matmul %16, %18, %cst_10 {dimension_numbers = #tpu.dot_dimension_numbers<[1], [0], [0], [1], [0, 0, 1, 1], [], []>} : vector<8x72xf32>, vector<72x128xf32>, vector<8x128xf32> -> vector<8x128xf32>
    %20 = arith.addf %15, %19 : vector<8x128xf32>
    %c0_11 = arith.constant 0 : index
    %c0_12 = arith.constant 0 : index
    %c0_13 = arith.constant 0 : index
    %21 = vector.load %arg4[%c0_11, %c0_12, %c0_13] : memref<1x8x128xf32, #tpu.memory_space<vmem>>, vector<1x8x128xf32>
    %22 = vector.shape_cast %21 : vector<1x8x128xf32> to vector<8x128xf32>
    %23 = arith.mulf %20, %22 : vector<8x128xf32>
    %c0_14 = arith.constant 0 : index
    %c0_15 = arith.constant 0 : index
    %c0_16 = arith.constant 0 : index
    %24 = vector.load %arg5[%c0_14, %c0_15, %c0_16] : memref<1x8x128xf32, #tpu.memory_space<vmem>>, vector<1x8x128xf32>
    %25 = vector.shape_cast %24 : vector<1x8x128xf32> to vector<8x128xf32>
    %26 = vector.shape_cast %23 : vector<8x128xf32> to vector<1x8x128xf32>
    tpu.vector_store %arg5[%c0_14, %c0_15, %c0_16], %26 {strides = array<i32>} : memref<1x8x128xf32, #tpu.memory_space<vmem>>, vector<1x8x128xf32>,
    %cst_17 = arith.constant dense<0.000000e+00> : vector<128xf32>
    %27 = vector.multi_reduction <add>, %23, %cst_17 [0] : vector<8x128xf32> to vector<128xf32>
    %28 = vector.shape_cast %27 : vector<128xf32> to vector<1x128xf32>
    %c0_18 = arith.constant 0 : index
    %c0_19 = arith.constant 0 : index
    %c0_20 = arith.constant 0 : index
    %c0_21 = arith.constant 0 : index
    %29 = vector.load %arg6[%c0_18, %c0_19, %c0_20, %c0_21] : memref<1x1x2x128xf32, #tpu.memory_space<vmem>>, vector<1x1x1x128xf32>
    %30 = vector.shape_cast %29 : vector<1x1x1x128xf32> to vector<1x128xf32>
    %31 = vector.shape_cast %28 : vector<1x128xf32> to vector<1x1x1x128xf32>
    tpu.vector_store %arg6[%c0_18, %c0_19, %c0_20, %c0_21], %31 {strides = array<i32>} : memref<1x1x2x128xf32, #tpu.memory_space<vmem>>, vector<1x1x1x128xf32>,
    %32 = arith.mulf %23, %23 : vector<8x128xf32>
    %cst_22 = arith.constant dense<0.000000e+00> : vector<128xf32>
    %33 = vector.multi_reduction <add>, %32, %cst_22 [0] : vector<8x128xf32> to vector<128xf32>
    %34 = vector.shape_cast %33 : vector<128xf32> to vector<1x128xf32>
    %c0_23 = arith.constant 0 : index
    %c0_24 = arith.constant 0 : index
    %c1_25 = arith.constant 1 : index
    %c0_26 = arith.constant 0 : index
    %35 = vector.load %arg6[%c0_23, %c0_24, %c1_25, %c0_26] : memref<1x1x2x128xf32, #tpu.memory_space<vmem>>, vector<1x1x1x128xf32>
    %36 = vector.shape_cast %35 : vector<1x1x1x128xf32> to vector<1x128xf32>
    %37 = vector.shape_cast %34 : vector<1x128xf32> to vector<1x1x1x128xf32>
    tpu.vector_store %arg6[%c0_23, %c0_24, %c1_25, %c0_26], %37 {strides = array<i32>} : memref<1x1x2x128xf32, #tpu.memory_space<vmem>>, vector<1x1x1x128xf32>,
    return
  }
  func.func @transform_0(%arg0: i32, %arg1: i32) -> (i32, i32, i32) {
    %c0_i32 = arith.constant 0 : i32
    %c0_i32_0 = arith.constant 0 : i32
    %c0_i32_1 = arith.constant 0 : i32
    return %arg0, %c0_i32, %c0_i32_0 : i32, i32, i32
  }
  func.func @transform_1(%arg0: i32, %arg1: i32) -> (i32, i32, i32) {
    %c0_i32 = arith.constant 0 : i32
    %c0_i32_0 = arith.constant 0 : i32
    %c0_i32_1 = arith.constant 0 : i32
    %c0_i32_2 = arith.constant 0 : i32
    return %c0_i32, %c0_i32_0, %c0_i32_1 : i32, i32, i32
  }
  func.func @transform_2(%arg0: i32, %arg1: i32) -> (i32, i32, i32) {
    %c0_i32 = arith.constant 0 : i32
    %c0_i32_0 = arith.constant 0 : i32
    return %arg0, %arg1, %c0_i32 : i32, i32, i32
  }
  func.func @transform_3(%arg0: i32, %arg1: i32) -> (i32, i32, i32) {
    %c0_i32 = arith.constant 0 : i32
    %c0_i32_0 = arith.constant 0 : i32
    return %arg0, %arg1, %c0_i32 : i32, i32, i32
  }
  func.func @transform_4(%arg0: i32, %arg1: i32) -> (i32, i32, i32, i32) {
    %c0_i32 = arith.constant 0 : i32
    %c0_i32_0 = arith.constant 0 : i32
    %c0_i32_1 = arith.constant 0 : i32
    return %arg0, %arg1, %c0_i32, %c0_i32_0 : i32, i32, i32, i32
  }
}

module attributes {stable_mosaic.version = 11 : i64} {
  func.func @bn_relu_kernel(%arg0: i32, %arg1: memref<8x128xf32, #tpu.memory_space<vmem>>, %arg2: memref<1x128xf32, #tpu.memory_space<vmem>>, %arg3: memref<1x128xf32, #tpu.memory_space<vmem>>, %arg4: memref<8x128xf32, #tpu.memory_space<vmem>>) attributes {dimension_semantics = [#tpu.dimension_semantics<parallel>], iteration_bounds = array<i64: 4>, scalar_prefetch = 0 : i64, scratch_operands = 0 : i64, tpu.core_type = #tpu.core_type<tc>, window_params = [{transform_indices = @transform_0, window_bounds = array<i64: 8, 128>}, {pipeline_mode = #tpu.pipeline_mode<synchronous>, transform_indices = @transform_1, window_bounds = array<i64: 1, 128>}, {pipeline_mode = #tpu.pipeline_mode<synchronous>, transform_indices = @transform_2, window_bounds = array<i64: 1, 128>}, {transform_indices = @transform_3, window_bounds = array<i64: 8, 128>}]} {
    %c0 = arith.constant 0 : index
    %c0_0 = arith.constant 0 : index
    %0 = vector.load %arg1[%c0, %c0_0] : memref<8x128xf32, #tpu.memory_space<vmem>>, vector<8x128xf32>
    %c0_1 = arith.constant 0 : index
    %c0_2 = arith.constant 0 : index
    %1 = vector.load %arg2[%c0_1, %c0_2] : memref<1x128xf32, #tpu.memory_space<vmem>>, vector<1x128xf32>
    %2 = vector.broadcast %1 : vector<1x128xf32> to vector<8x128xf32>
    %3 = arith.mulf %0, %2 : vector<8x128xf32>
    %c0_3 = arith.constant 0 : index
    %c0_4 = arith.constant 0 : index
    %4 = vector.load %arg3[%c0_3, %c0_4] : memref<1x128xf32, #tpu.memory_space<vmem>>, vector<1x128xf32>
    %5 = vector.broadcast %4 : vector<1x128xf32> to vector<8x128xf32>
    %6 = arith.addf %3, %5 : vector<8x128xf32>
    %cst = arith.constant 0.000000e+00 : f32
    %7 = vector.broadcast %cst : f32 to vector<8x128xf32>
    %8 = arith.maximumf %6, %7 : vector<8x128xf32>
    %c0_5 = arith.constant 0 : index
    %c0_6 = arith.constant 0 : index
    %9 = vector.load %arg4[%c0_5, %c0_6] : memref<8x128xf32, #tpu.memory_space<vmem>>, vector<8x128xf32>
    tpu.vector_store %arg4[%c0_5, %c0_6], %8 {strides = array<i32>} : memref<8x128xf32, #tpu.memory_space<vmem>>, vector<8x128xf32>,
    return
  }
  func.func @transform_0(%arg0: i32) -> (i32, i32) {
    %c0_i32 = arith.constant 0 : i32
    %c0_i32_0 = arith.constant 0 : i32
    return %arg0, %c0_i32 : i32, i32
  }
  func.func @transform_1(%arg0: i32) -> (i32, i32) {
    %c0_i32 = arith.constant 0 : i32
    %c0_i32_0 = arith.constant 0 : i32
    %c0_i32_1 = arith.constant 0 : i32
    return %c0_i32, %c0_i32_0 : i32, i32
  }
  func.func @transform_2(%arg0: i32) -> (i32, i32) {
    %c0_i32 = arith.constant 0 : i32
    %c0_i32_0 = arith.constant 0 : i32
    %c0_i32_1 = arith.constant 0 : i32
    return %c0_i32, %c0_i32_0 : i32, i32
  }
  func.func @transform_3(%arg0: i32) -> (i32, i32) {
    %c0_i32 = arith.constant 0 : i32
    %c0_i32_0 = arith.constant 0 : i32
    return %arg0, %c0_i32 : i32, i32
  }
}

</mosaic_0001>

<llo_original>
// kernel: tile.13
$region0: #{tile.13}
  #allocation0 [shape = 's32[1]{0}', space=sflag, size = 0x4, scoped, tag = 'scoped memory for tile.13']
  %s0 = inlined_call_operand.vmem [shape: f32[8], index: 0, kind: input, shape index: {}]
  %s1 = inlined_call_operand.vmem [shape: f32[16,8], index: 1, kind: output, shape index: {}]
  // Predicated region
  $region2: #{tile.13} parent=0 // pred_check
    _
  $region3: #{tile.13} parent=0 // pred_check_branch
    %3 = sbr.rel (0) target = $region5
  $region4: #{tile.13} parent=0 // pred_region
    _
  $region5: #{tile.13} parent=0 // pred_fallthru
    _
  %v4 = vld [vmem:[%s0] ss:$0 sm:$0xff]
  %5 = vst [vmem:[%s1] sm:$0xff] %v4
  %s6 = scalar_lea.vmem %s1, 8
  %7 = vst [vmem:[%s6] sm:$0xff] %v4

// kernel: tile.14
$region0: #{tile.14}
  %s0 = inlined_call_operand.vmem [shape: f32[16,8], index: 0, kind: input, shape index: {}]
  %s1 = inlined_call_operand.vmem [shape: f32[1,128], index: 1, kind: output, shape index: {}]
  $region1: #{tile.14} parent=0
    #allocation0 [shape = 'u8[4096]{0}', space=vmem, size = 0x1000, scoped, tag = 'scoped mem for output reshape']
    %v2 = vld [vmem:[%s0] sm:$0x1]
    %vm3 = vcmask 64512
    %4 = vst.msk [vmem:[#allocation0] sm:$0x1] %vm3, %v2
    %s5 = scalar_lea.vmem %s0, 15
    %v6 = vld [vmem:[%s5] sm:$0x1]
    %7 = vrot.lane.b32.xlu0 %v6, 120
    %v8 = vpop.permute.xlu0 %7
    %vm9 = vcmask 1048512
    %10 = vst.msk [vmem:[#allocation0] sm:$0x1] %vm9, %v8
    %s11 = scalar_lea.vmem %s0, 14
    %v12 = vld [vmem:[%s11] sm:$0x1]
    %13 = vrot.lane.b32.xlu0 %v12, 112
    %v14 = vpop.permute.xlu0 %13
    %vm15 = vcmask 982912
    %16 = vst.msk [vmem:[#allocation0] sm:$0x1] %vm15, %v14
    %s17 = scalar_lea.vmem %s0, 13
    %v18 = vld [vmem:[%s17] sm:$0x1]
    %19 = vrot.lane.b32.xlu0 %v18, 104
    %v20 = vpop.permute.xlu0 %19
    %vm21 = vcmask 917312
    %22 = vst.msk [vmem:[#allocation0] sm:$0x1] %vm21, %v20
    %s23 = scalar_lea.vmem %s0, 12
    %v24 = vld [vmem:[%s23] sm:$0x1]
    %25 = vrot.lane.b32.xlu0 %v24, 96
    %v26 = vpop.permute.xlu0 %25
    %vm27 = vcmask 851712
    %28 = vst.msk [vmem:[#allocation0] sm:$0x1] %vm27, %v26
    %s29 = scalar_lea.vmem %s0, 11
    %v30 = vld [vmem:[%s29] sm:$0x1]
    %31 = vrot.lane.b32.xlu0 %v30, 88
    %v32 = vpop.permute.xlu0 %31
    %vm33 = vcmask 786112
    %34 = vst.msk [vmem:[#allocation0] sm:$0x1] %vm33, %v32
    %s35 = scalar_lea.vmem %s0, 10
    %v36 = vld [vmem:[%s35] sm:$0x1]
    %37 = vrot.lane.b32.xlu0 %v36, 80
    %v38 = vpop.permute.xlu0 %37
    %vm39 = vcmask 720512
    %40 = vst.msk [vmem:[#allocation0] sm:$0x1] %vm39, %v38
    %s41 = scalar_lea.vmem %s0, 9
    %v42 = vld [vmem:[%s41] sm:$0x1]
    %43 = vrot.lane.b32.xlu0 %v42, 72
    %v44 = vpop.permute.xlu0 %43
    %vm45 = vcmask 654912
    %46 = vst.msk [vmem:[#allocation0] sm:$0x1] %vm45, %v44
    %s47 = scalar_lea.vmem %s0, 8
    %v48 = vld [vmem:[%s47] sm:$0x1]
    %49 = vrot.lane.b32.xlu0 %v48, 64
    %v50 = vpop.permute.xlu0 %49
    %vm51 = vcmask 589312
    %52 = vst.msk [vmem:[#allocation0] sm:$0x1] %vm51, %v50
    %s53 = scalar_lea.vmem %s0, 7
    %v54 = vld [vmem:[%s53] sm:$0x1]
    %55 = vrot.lane.b32.xlu0 %v54, 56
    %v56 = vpop.permute.xlu0 %55
    %vm57 = vcmask 523712
    %58 = vst.msk [vmem:[#allocation0] sm:$0x1] %vm57, %v56
    %s59 = scalar_lea.vmem %s0, 6
    %v60 = vld [vmem:[%s59] sm:$0x1]
    %61 = vrot.lane.b32.xlu0 %v60, 48
    %v62 = vpop.permute.xlu0 %61
    %vm63 = vcmask 458112
    %64 = vst.msk [vmem:[#allocation0] sm:$0x1] %vm63, %v62
    %s65 = scalar_lea.vmem %s0, 5
    %v66 = vld [vmem:[%s65] sm:$0x1]
    %67 = vrot.lane.b32.xlu0 %v66, 40
    %v68 = vpop.permute.xlu0 %67
    %vm69 = vcmask 392512
    %70 = vst.msk [vmem:[#allocation0] sm:$0x1] %vm69, %v68
    %s71 = scalar_lea.vmem %s0, 4
    %v72 = vld [vmem:[%s71] sm:$0x1]
    %73 = vrot.lane.b32.xlu0 %v72, 32
    %v74 = vpop.permute.xlu0 %73
    %vm75 = vcmask 326912
    %76 = vst.msk [vmem:[#allocation0] sm:$0x1] %vm75, %v74
    %s77 = scalar_lea.vmem %s0, 3
    %v78 = vld [vmem:[%s77] sm:$0x1]
    %79 = vrot.lane.b32.xlu0 %v78, 24
    %v80 = vpop.permute.xlu0 %79
    %vm81 = vcmask 261312
    %82 = vst.msk [vmem:[#allocation0] sm:$0x1] %vm81, %v80
    %s83 = scalar_lea.vmem %s0, 2
    %v84 = vld [vmem:[%s83] sm:$0x1]
    %85 = vrot.lane.b32.xlu0 %v84, 16
    %v86 = vpop.permute.xlu0 %85
    %vm87 = vcmask 195712
    %88 = vst.msk [vmem:[#allocation0] sm:$0x1] %vm87, %v86
    %s89 = scalar_lea.vmem %s0, 1
    %v90 = vld [vmem:[%s89] sm:$0x1]
    %91 = vrot.lane.b32.xlu0 %v90, 8
    %v92 = vpop.permute.xlu0 %91
    %vm93 = vcmask 130112
    %94 = vst.msk [vmem:[#allocation0] sm:$0x1] %vm93, %v92
    %s96 = ssub.s32 2, 1
    %v97 = vld [vmem:[#allocation0] sm:%s96]
    %s99 = ssub.s32 2, 1
    %100 = vst [vmem:[%s1] sm:%s99] %v97

// kernel: sparse_cnn_block_forward.2
$region0: #{sparse_cnn_block_forward.2}
  #allocation0 [shape = 'u32[]', space=smem, size = 0x4, offset = 0x4, fixed_abs, tag = 'smem constant byte address 0x4 - core index']
  #allocation1 [shape = 'u32[72,128]{1,0:T(1,128)}', space=vmem, size = 0x9000, scoped, tag = 'internal scratch']
  %s0 = inlined_call_operand.vmem [shape: f32[2,18,72], index: 0, kind: input, shape index: {}]
  %s1 = inlined_call_operand.vmem [shape: f32[3,72,128], index: 1, kind: input, shape index: {}]
  %s2 = inlined_call_operand.vmem [shape: f32[2,16,128], index: 2, kind: input, shape index: {}]
  %s3 = inlined_call_operand.vmem [shape: f32[2,16,128], index: 3, kind: output, shape index: {0}]
  %s4 = inlined_call_operand.vmem [shape: f32[2,2,2,128], index: 4, kind: output, shape index: {1}]
  %5 = xla_tuple %s3, %s4
  %s6 = sld [smem:[#allocation0]]
  $region53: #{sparse_cnn_block_forward.2} parent=0
    _
  %s8 = ssub.s32 1, %s6
  %s9 = scalar_select 0, %s8, %s6
  loop: start=0, step=1, limit=6
  $region2: #{sparse_cnn_block_forward.2} parent=0 // loop_pre_header
    _
  $region3: #{sparse_cnn_block_forward.2} parent=0 // loop_header
    %s11 = sphi 0, %s15
    %p12 = scmp.ge.s32.totalorder %s11, 6
    %s18 = sphi 0, %s30
    %s19 = sphi 0, %s26
    %s20 = sphi 0, %s18
    %s21 = sphi 0, %s19
    %s22 = sphi 0, %s20
    %s23 = sphi 0, %s21
    %s33 = sphi 0, %s35
    %s36 = sphi 0, %s33
    %s37 = sphi 0, %s36
    %s53 = sphi 0, %s37
    %s57 = sphi 0, %s57
    %s59 = sphi 0, %s57
    %s60 = sphi 0, %s59
    %s74 = sphi 0, %s60
    %s82 = sphi 0, %s84
    %s85 = sphi 0, %s82
    %s86 = sphi 0, %s85
    %s102 = sphi 0, %s86
    %s110 = sphi 0, %s112
    %s113 = sphi 0, %s110
    %s114 = sphi 0, %s113
    %s130 = sphi 0, %s114
    %s138 = sphi 0, %s140
    %s141 = sphi 0, %s138
    %s142 = sphi 0, %s141
    %s158 = sphi 0, %s142
  $region4: #{sparse_cnn_block_forward.2} parent=0 // loop_header_branch
    %14 = sbr.rel (%p12) target = $region8
  $region5: #{sparse_cnn_block_forward.2} parent=0 // loop_body
    %s16 = ssub.s32 %s11, 1
    %s17 = ssub.s32 %s11, 2
    %s24 = sadd.s32 1, %s19
    %p25 = scmp.ge.s32.totalorder %s24, 2
    %s26 = scalar_select %p25, 0, %s24
    %s27 = sadd.s32 1, %s18
    %s28 = scalar_select %p25, %s27, %s18
    %p29 = scmp.ge.s32.totalorder %s28, 2
    %s30 = scalar_select %p29, 0, %s28
    %s31 = ssub.s32 %s18, %s30
    %p32 = scmp.eq.s32.totalorder %s31, 0
    %s34 = sadd.s32 %s33, 1
    %s35 = scalar_select %p32, %s33, %s34
    %p38 = pneg %p32
    %p39 = scmp.eq.s32.totalorder %s11, 3
    %p40 = por %p38, %p39
    %p41 = scmp.ne.s32.totalorder %s33, %s36
    %p42 = scmp.eq.s32.totalorder %s11, 0
    %p43 = por %p41, %p42
    %p44 = scmp.ne.s32.totalorder %s33, %s36
    %p45 = scmp.eq.s32.totalorder %s16, 3
    %p46 = por %p44, %p45
    %p47 = scmp.ne.s32.totalorder %s36, %s37
    %p48 = scmp.eq.s32.totalorder %s16, 0
    %p49 = por %p47, %p48
    %p50 = scmp.ne.s32.totalorder %s36, %s37
    %p51 = scmp.eq.s32.totalorder %s17, 3
    %p52 = por %p50, %p51
    %p54 = scmp.ne.s32.totalorder %s37, %s53
    %p55 = scmp.eq.s32.totalorder %s17, 0
    %p56 = por %p54, %p55
    %s58 = sadd.s32 %s57, 1
    %p61 = scmp.eq.s32.totalorder %s11, 3
    %p62 = scmp.ne.s32.totalorder %s57, %s59
    %p63 = scmp.eq.s32.totalorder %s11, 0
    %p64 = por %p62, %p63
    %p65 = scmp.ne.s32.totalorder %s57, %s59
    %p66 = scmp.eq.s32.totalorder %s16, 3
    %p67 = por %p65, %p66
    %p68 = scmp.ne.s32.totalorder %s59, %s60
    %p69 = scmp.eq.s32.totalorder %s16, 0
    %p70 = por %p68, %p69
    %p71 = scmp.ne.s32.totalorder %s59, %s60
    %p72 = scmp.eq.s32.totalorder %s17, 3
    %p73 = por %p71, %p72
    %p75 = scmp.ne.s32.totalorder %s60, %s74
    %p76 = scmp.eq.s32.totalorder %s17, 0
    %p77 = por %p75, %p76
    %s78 = ssub.s32 %s18, %s30
    %s79 = ssub.s32 %s19, %s26
    %s80 = sor.u32 %s78, %s79
    %p81 = scmp.eq.s32.totalorder %s80, 0
    %s83 = sadd.s32 %s82, 1
    %s84 = scalar_select %p81, %s82, %s83
    %p87 = pneg %p81
    %p88 = scmp.eq.s32.totalorder %s11, 3
    %p89 = por %p87, %p88
    %p90 = scmp.ne.s32.totalorder %s82, %s85
    %p91 = scmp.eq.s32.totalorder %s11, 0
    %p92 = por %p90, %p91
    %p93 = scmp.ne.s32.totalorder %s82, %s85
    %p94 = scmp.eq.s32.totalorder %s16, 3
    %p95 = por %p93, %p94
    %p96 = scmp.ne.s32.totalorder %s85, %s86
    %p97 = scmp.eq.s32.totalorder %s16, 0
    %p98 = por %p96, %p97
    %p99 = scmp.ne.s32.totalorder %s85, %s86
    %p100 = scmp.eq.s32.totalorder %s17, 3
    %p101 = por %p99, %p100
    %p103 = scmp.ne.s32.totalorder %s86, %s102
    %p104 = scmp.eq.s32.totalorder %s17, 0
    %p105 = por %p103, %p104
    %s106 = ssub.s32 %s18, %s30
    %s107 = ssub.s32 %s19, %s26
    %s108 = sor.u32 %s106, %s107
    %p109 = scmp.eq.s32.totalorder %s108, 0
    %s111 = sadd.s32 %s110, 1
    %s112 = scalar_select %p109, %s110, %s111
    %p115 = pneg %p109
    %p116 = scmp.eq.s32.totalorder %s11, 3
    %p117 = por %p115, %p116
    %p118 = scmp.ne.s32.totalorder %s110, %s113
    %p119 = scmp.eq.s32.totalorder %s11, 0
    %p120 = por %p118, %p119
    %p121 = scmp.ne.s32.totalorder %s110, %s113
    %p122 = scmp.eq.s32.totalorder %s16, 3
    %p123 = por %p121, %p122
    %p124 = scmp.ne.s32.totalorder %s113, %s114
    %p125 = scmp.eq.s32.totalorder %s16, 0
    %p126 = por %p124, %p125
    %p127 = scmp.ne.s32.totalorder %s113, %s114
    %p128 = scmp.eq.s32.totalorder %s17, 3
    %p129 = por %p127, %p128
    %p131 = scmp.ne.s32.totalorder %s114, %s130
    %p132 = scmp.eq.s32.totalorder %s17, 0
    %p133 = por %p131, %p132
    %s134 = ssub.s32 %s18, %s30
    %s135 = ssub.s32 %s19, %s26
    %s136 = sor.u32 %s134, %s135
    %p137 = scmp.eq.s32.totalorder %s136, 0
    %s139 = sadd.s32 %s138, 1
    %s140 = scalar_select %p137, %s138, %s139
    %p143 = pneg %p137
    %p144 = scmp.eq.s32.totalorder %s11, 3
    %p145 = por %p143, %p144
    %p146 = scmp.ne.s32.totalorder %s138, %s141
    %p147 = scmp.eq.s32.totalorder %s11, 0
    %p148 = por %p146, %p147
    %p149 = scmp.ne.s32.totalorder %s138, %s141
    %p150 = scmp.eq.s32.totalorder %s16, 3
    %p151 = por %p149, %p150
    %p152 = scmp.ne.s32.totalorder %s141, %s142
    %p153 = scmp.eq.s32.totalorder %s16, 0
    %p154 = por %p152, %p153
    %p155 = scmp.ne.s32.totalorder %s141, %s142
    %p156 = scmp.eq.s32.totalorder %s17, 3
    %p157 = por %p155, %p156
    %p159 = scmp.ne.s32.totalorder %s142, %s158
    %p160 = scmp.eq.s32.totalorder %s17, 0
    %p161 = por %p159, %p160
    %p162 = scmp.le.s32.totalorder 1, %s11
    %p163 = scmp.lt.s32.totalorder %s11, 5
    %p164 = pnand %p162, %p163
    %p165 = pneg %p164
    // Predicated region
    $region9: #{sparse_cnn_block_forward.2} parent=5 // pred_check
      _
    $region10: #{sparse_cnn_block_forward.2} parent=5 // pred_check_branch
      %167 = sbr.rel (%p164) target = $region12
    $region11: #{sparse_cnn_block_forward.2} parent=5 // pred_region
      %s168 = ssub.s32 %s11, 1
      // Predicated region
      $region13: #{sparse_cnn_block_forward.2} parent=11 // pred_check
        %p169 = pneg %p70
      $region14: #{sparse_cnn_block_forward.2} parent=11 // pred_check_branch
        %171 = sbr.rel (%p169) target = $region16
      $region15: #{sparse_cnn_block_forward.2} parent=11 // pred_region
        _
      $region16: #{sparse_cnn_block_forward.2} parent=11 // pred_fallthru
        _
    $region12: #{sparse_cnn_block_forward.2} parent=5 // pred_fallthru
      _
    %p172 = scmp.lt.s32.totalorder %s11, 4
    // Predicated region
    $region17: #{sparse_cnn_block_forward.2} parent=5 // pred_check
      %p173 = pneg %p172
    $region18: #{sparse_cnn_block_forward.2} parent=5 // pred_check_branch
      %175 = sbr.rel (%p173) target = $region20
    $region19: #{sparse_cnn_block_forward.2} parent=5 // pred_region
      // Predicated region
      $region21: #{sparse_cnn_block_forward.2} parent=19 // pred_check
        %p176 = pneg %p43
      $region22: #{sparse_cnn_block_forward.2} parent=19 // pred_check_branch
        %178 = sbr.rel (%p176) target = $region24
      $region23: #{sparse_cnn_block_forward.2} parent=19 // pred_region
        %p179 = scmp.lt.s32.totalorder %s18, 1
        %s180 = scalar_select %p179, %s18, 1
        %s181 = smul.addr %s180, 3
        %s182 = smul.addr %s181, 8
        %s183 = scalar_lea.vmem %s0, %s182
      $region24: #{sparse_cnn_block_forward.2} parent=19 // pred_fallthru
        _
      // Predicated region
      $region25: #{sparse_cnn_block_forward.2} parent=19 // pred_check
        %p184 = pneg %p92
      $region26: #{sparse_cnn_block_forward.2} parent=19 // pred_check_branch
        %186 = sbr.rel (%p184) target = $region28
      $region27: #{sparse_cnn_block_forward.2} parent=19 // pred_region
        %p187 = scmp.lt.s32.totalorder %s18, 1
        %s188 = scalar_select %p187, %s18, 1
        %p189 = scmp.lt.s32.totalorder %s19, 1
        %s190 = scalar_select %p189, %s19, 1
        %s191 = smul.addr %s188, 2
        %s192 = sadd.s32 %s190, %s191
        %s193 = smul.addr %s192, 8
        %s194 = scalar_lea.vmem %s2, %s193
      $region28: #{sparse_cnn_block_forward.2} parent=19 // pred_fallthru
        _
    $region20: #{sparse_cnn_block_forward.2} parent=5 // pred_fallthru
      _
    %p195 = scmp.le.s32.totalorder 1, %s11
    %p196 = scmp.lt.s32.totalorder %s11, 5
    %p197 = pnand %p195, %p196
    %p198 = pneg %p197
    // Predicated region
    $region29: #{sparse_cnn_block_forward.2} parent=5 // pred_check
      _
    $region30: #{sparse_cnn_block_forward.2} parent=5 // pred_check_branch
      %200 = sbr.rel (%p197) target = $region32
    $region31: #{sparse_cnn_block_forward.2} parent=5 // pred_region
      %s201 = ssub.s32 %s11, 1
      %p202 = scmp.lt.s32.totalorder %s20, 1
      %s203 = scalar_select %p202, %s20, 1
      %s204 = smul.addr %s203, 3
      %s205 = smul.addr %s204, 8
      %s206 = scalar_lea.vmem %s0, %s205
      %p207 = pneg %p49
      %p208 = pneg %p46
      %p209 = pneg %p70
      %p210 = pneg %p67
      %p211 = scmp.lt.s32.totalorder %s20, 1
      %s212 = scalar_select %p211, %s20, 1
      %p213 = scmp.lt.s32.totalorder %s21, 1
      %s214 = scalar_select %p213, %s21, 1
      %s215 = smul.addr %s212, 2
      %s216 = sadd.s32 %s214, %s215
      %s217 = smul.addr %s216, 8
      %s218 = scalar_lea.vmem %s2, %s217
      %p219 = pneg %p98
      %p220 = pneg %p95
      %p221 = pneg %p126
      %p222 = pneg %p123
      %p223 = scmp.lt.s32.totalorder %s20, 1
      %s224 = scalar_select %p223, %s20, 1
      %p225 = scmp.lt.s32.totalorder %s21, 1
      %s226 = scalar_select %p225, %s21, 1
      %s227 = smul.addr %s224, 2
      %s228 = sadd.s32 %s226, %s227
      %s229 = smul.addr %s228, 8
      %s230 = scalar_lea.vmem %s3, %s229
      %p231 = pneg %p154
      %p232 = pneg %p151
      %p233 = scmp.lt.s32.totalorder %s20, 1
      %s234 = scalar_select %p233, %s20, 1
      %p235 = scmp.lt.s32.totalorder %s21, 1
      %s236 = scalar_select %p235, %s21, 1
      %s237 = smul.addr %s234, 2
      %s238 = sadd.s32 %s236, %s237
      %s239 = smul.addr %s238, 2
      %s240 = scalar_lea.vmem %s4, %s239
      %p241 = scmp.lt.s32.totalorder %s20, 1
      %s242 = scalar_select %p241, %s20, 1
      %s243 = smul.addr %s242, 3
      %s244 = smul.addr %s243, 8
      %s245 = scalar_lea.vmem %s0, %s244
      %p246 = scmp.lt.s32.totalorder %s20, 1
      %s247 = scalar_select %p246, %s20, 1
      %p248 = scmp.lt.s32.totalorder %s21, 1
      %s249 = scalar_select %p248, %s21, 1
      %s250 = smul.addr %s247, 2
      %s251 = sadd.s32 %s249, %s250
      %s252 = smul.addr %s251, 8
      %s253 = scalar_lea.vmem %s2, %s252
      %p254 = scmp.lt.s32.totalorder %s20, 1
      %s255 = scalar_select %p254, %s20, 1
      %p256 = scmp.lt.s32.totalorder %s21, 1
      %s257 = scalar_select %p256, %s21, 1
      %s258 = smul.addr %s255, 2
      %s259 = sadd.s32 %s257, %s258
      %s260 = smul.addr %s259, 8
      %s261 = scalar_lea.vmem %s3, %s260
      %p262 = scmp.lt.s32.totalorder %s20, 1
      %s263 = scalar_select %p262, %s20, 1
      %p264 = scmp.lt.s32.totalorder %s21, 1
      %s265 = scalar_select %p264, %s21, 1
      %s266 = smul.addr %s263, 2
      %s267 = sadd.s32 %s265, %s266
      %s268 = smul.addr %s267, 2
      %s269 = scalar_lea.vmem %s4, %s268
      %s270 = smul.u32 %s21, 8
      %s271 = scalar_lea.vmem %s245, %s270
      %v272 = vld [vmem:[%s271] sm:$0xff]
      %v273 = vld [vmem:[%s271 + $0x8] sm:$0x3]
      %v274 = vld [vmem:[%s1] sm:$0xff]
      %v275 = vld [vmem:[%s1 + $0x8] sm:$0xff]
      %v276 = vld [vmem:[%s1 + $0x10] sm:$0xff]
      %v277 = vld [vmem:[%s1 + $0x18] sm:$0xff]
      %v278 = vld [vmem:[%s1 + $0x20] sm:$0xff]
      %v279 = vld [vmem:[%s1 + $0x28] sm:$0xff]
      %v280 = vld [vmem:[%s1 + $0x30] sm:$0xff]
      %v281 = vld [vmem:[%s1 + $0x38] sm:$0xff]
      %v282 = vld [vmem:[%s1 + $0x40] sm:$0xff]
      %s283 = scalar_lea.vmem %s1, 72
      %v284 = vld [vmem:[%s283] sm:$0xff]
      %v285 = vld [vmem:[%s283 + $0x8] sm:$0xff]
      %v286 = vld [vmem:[%s283 + $0x10] sm:$0xff]
      %v287 = vld [vmem:[%s283 + $0x18] sm:$0xff]
      %v288 = vld [vmem:[%s283 + $0x20] sm:$0xff]
      %v289 = vld [vmem:[%s283 + $0x28] sm:$0xff]
      %v290 = vld [vmem:[%s283 + $0x30] sm:$0xff]
      %v291 = vld [vmem:[%s283 + $0x38] sm:$0xff]
      %v292 = vld [vmem:[%s283 + $0x40] sm:$0xff]
      %vm295 = vcmask 1046528
      %v296 = vrot.slane %v272, 1
      %v297 = vrot.slane %v273, 1
      %v298 = vsel %vm295, %v296, %v297
      %vm299 = vcmask 588800
      %v300 = vsel %vm299, %v298, 0
      %302 = vmatpush.msra.mxu0 0.0
      %303 = vmatpush.msra.mxu0 0.0
      %304 = vmatpush.msra.mxu0 0.0
      %305 = vmatpush.msra.mxu0 0.0
      %306 = vmatpush.msra.mxu0 0.0
      %307 = vmatpush.msra.mxu0 0.0
      %308 = vmatpush.msra.mxu0 0.0
      %309 = vmatpush.msra.mxu0 %v292
      %310 = vmatpush.msra.mxu0 %v291
      %311 = vmatpush.msra.mxu0 %v290
      %312 = vmatpush.msra.mxu0 %v289
      %313 = vmatpush.msra.mxu0 %v288
      %314 = vmatpush.msra.mxu0 %v287
      %315 = vmatpush.msra.mxu0 %v286
      %316 = vmatpush.msra.mxu0 %v285
      %317 = vmatpush.msra.mxu0 %v284
      %318 = vmatmul.f32.gmra.mxu0 %v300
      %v319 = vpop.f32.mrf.mxu0
      %v320 = vadd.f32 0.0, %v319
      %321 = vdwg.mxu0
      %v322 = vsel %vm299, %v272, 0
      %324 = vmatpush.msra.mxu0 0.0
      %325 = vmatpush.msra.mxu0 0.0
      %326 = vmatpush.msra.mxu0 0.0
      %327 = vmatpush.msra.mxu0 0.0
      %328 = vmatpush.msra.mxu0 0.0
      %329 = vmatpush.msra.mxu0 0.0
      %330 = vmatpush.msra.mxu0 0.0
      %331 = vmatpush.msra.mxu0 %v282
      %332 = vmatpush.msra.mxu0 %v281
      %333 = vmatpush.msra.mxu0 %v280
      %334 = vmatpush.msra.mxu0 %v279
      %335 = vmatpush.msra.mxu0 %v278
      %336 = vmatpush.msra.mxu0 %v277
      %337 = vmatpush.msra.mxu0 %v276
      %338 = vmatpush.msra.mxu0 %v275
      %339 = vmatpush.msra.mxu0 %v274
      %340 = vmatmul.f32.gmra.mxu0 %v322
      %v341 = vpop.f32.mrf.mxu0
      %v342 = vadd.f32 %v320, %v341
      %343 = vdwg.mxu0
      %s344 = scalar_lea.vmem %s1, 144
      %v345 = vld [vmem:[%s344] sm:$0xff]
      %v346 = vld [vmem:[%s344 + $0x8] sm:$0xff]
      %v347 = vld [vmem:[%s344 + $0x10] sm:$0xff]
      %v348 = vld [vmem:[%s344 + $0x18] sm:$0xff]
      %v349 = vld [vmem:[%s344 + $0x20] sm:$0xff]
      %v350 = vld [vmem:[%s344 + $0x28] sm:$0xff]
      %v351 = vld [vmem:[%s344 + $0x30] sm:$0xff]
      %v352 = vld [vmem:[%s344 + $0x38] sm:$0xff]
      %v353 = vld [vmem:[%s344 + $0x40] sm:$0xff]
      %vm354 = vcmask 1045504
      %v355 = vrot.slane %v272, 2
      %v356 = vrot.slane %v273, 2
      %v357 = vsel %vm354, %v355, %v356
      %v358 = vsel %vm299, %v357, 0
      %360 = vmatpush.msra.mxu0 0.0
      %361 = vmatpush.msra.mxu0 0.0
      %362 = vmatpush.msra.mxu0 0.0
      %363 = vmatpush.msra.mxu0 0.0
      %364 = vmatpush.msra.mxu0 0.0
      %365 = vmatpush.msra.mxu0 0.0
      %366 = vmatpush.msra.mxu0 0.0
      %367 = vmatpush.msra.mxu0 %v353
      %368 = vmatpush.msra.mxu0 %v352
      %369 = vmatpush.msra.mxu0 %v351
      %370 = vmatpush.msra.mxu0 %v350
      %371 = vmatpush.msra.mxu0 %v349
      %372 = vmatpush.msra.mxu0 %v348
      %373 = vmatpush.msra.mxu0 %v347
      %374 = vmatpush.msra.mxu0 %v346
      %375 = vmatpush.msra.mxu0 %v345
      %376 = vmatmul.f32.gmra.mxu0 %v358
      %v377 = vpop.f32.mrf.mxu0
      %v378 = vadd.f32 0.0, %v377
      %379 = vdwg.mxu0
      %v380 = vadd.f32 %v342, %v378
      %v381 = vld [vmem:[%s253] sm:$0xff]
      %v382 = vmul.f32 %v380, %v381
      %383 = vst [vmem:[%s261] sm:$0xff] %v382
      %v384 = vrot.slane %v382, 4
      %v385 = vadd.f32 %v382, %v384
      %v386 = vrot.slane %v385, 2
      %v387 = vadd.f32 %v385, %v386
      %v388 = vrot.slane %v387, 1
      %v389 = vadd.f32 %v387, %v388
      %390 = vst [vmem:[%s269] sm:$0x1] %v389
      %v391 = vmul.f32 %v382, %v382
      %v392 = vrot.slane %v391, 4
      %v393 = vadd.f32 %v391, %v392
      %v394 = vrot.slane %v393, 2
      %v395 = vadd.f32 %v393, %v394
      %v396 = vrot.slane %v395, 1
      %v397 = vadd.f32 %v395, %v396
      %398 = vst [vmem:[%s269 + $0x1] sm:$0x1] %v397
      %p399 = scmp.lt.s32.totalorder %s20, 1
      %s400 = scalar_select %p399, %s20, 1
      %p401 = scmp.lt.s32.totalorder %s21, 1
      %s402 = scalar_select %p401, %s21, 1
      %s403 = smul.addr %s400, 2
      %s404 = sadd.s32 %s402, %s403
      %s405 = smul.addr %s404, 8
      %s406 = scalar_lea.vmem %s3, %s405
      %p407 = scmp.lt.s32.totalorder %s20, 1
      %s408 = scalar_select %p407, %s20, 1
      %p409 = scmp.lt.s32.totalorder %s21, 1
      %s410 = scalar_select %p409, %s21, 1
      %s411 = smul.addr %s408, 2
      %s412 = sadd.s32 %s410, %s411
      %s413 = smul.addr %s412, 2
      %s414 = scalar_lea.vmem %s4, %s413
      // Predicated region
      $region33: #{sparse_cnn_block_forward.2} parent=31 // pred_check
        %p415 = pneg %p123
      $region34: #{sparse_cnn_block_forward.2} parent=31 // pred_check_branch
        %417 = sbr.rel (%p415) target = $region36
      $region35: #{sparse_cnn_block_forward.2} parent=31 // pred_region
        _
      $region36: #{sparse_cnn_block_forward.2} parent=31 // pred_fallthru
        _
      // Predicated region
      $region37: #{sparse_cnn_block_forward.2} parent=31 // pred_check
        %p418 = pneg %p151
      $region38: #{sparse_cnn_block_forward.2} parent=31 // pred_check_branch
        %420 = sbr.rel (%p418) target = $region40
      $region39: #{sparse_cnn_block_forward.2} parent=31 // pred_region
        _
      $region40: #{sparse_cnn_block_forward.2} parent=31 // pred_fallthru
        _
    $region32: #{sparse_cnn_block_forward.2} parent=5 // pred_fallthru
      _
    %p421 = scmp.le.s32.totalorder 2, %s11
    // Predicated region
    $region41: #{sparse_cnn_block_forward.2} parent=5 // pred_check
      %p422 = pneg %p421
    $region42: #{sparse_cnn_block_forward.2} parent=5 // pred_check_branch
      %424 = sbr.rel (%p422) target = $region44
    $region43: #{sparse_cnn_block_forward.2} parent=5 // pred_region
      %s425 = ssub.s32 %s11, 2
      // Predicated region
      $region45: #{sparse_cnn_block_forward.2} parent=43 // pred_check
        %p426 = pneg %p129
      $region46: #{sparse_cnn_block_forward.2} parent=43 // pred_check_branch
        %428 = sbr.rel (%p426) target = $region48
      $region47: #{sparse_cnn_block_forward.2} parent=43 // pred_region
        %p429 = scmp.lt.s32.totalorder %s22, 1
        %s430 = scalar_select %p429, %s22, 1
        %p431 = scmp.lt.s32.totalorder %s23, 1
        %s432 = scalar_select %p431, %s23, 1
        %s433 = smul.addr %s430, 2
        %s434 = sadd.s32 %s432, %s433
        %s435 = smul.addr %s434, 8
        %s436 = scalar_lea.vmem %s3, %s435
      $region48: #{sparse_cnn_block_forward.2} parent=43 // pred_fallthru
        _
      // Predicated region
      $region49: #{sparse_cnn_block_forward.2} parent=43 // pred_check
        %p437 = pneg %p157
      $region50: #{sparse_cnn_block_forward.2} parent=43 // pred_check_branch
        %439 = sbr.rel (%p437) target = $region52
      $region51: #{sparse_cnn_block_forward.2} parent=43 // pred_region
        %p440 = scmp.lt.s32.totalorder %s22, 1
        %s441 = scalar_select %p440, %s22, 1
        %p442 = scmp.lt.s32.totalorder %s23, 1
        %s443 = scalar_select %p442, %s23, 1
        %s444 = smul.addr %s441, 2
        %s445 = sadd.s32 %s443, %s444
        %s446 = smul.addr %s445, 2
        %s447 = scalar_lea.vmem %s4, %s446
      $region52: #{sparse_cnn_block_forward.2} parent=43 // pred_fallthru
        _
    $region44: #{sparse_cnn_block_forward.2} parent=5 // pred_fallthru
      _
  $region6: #{sparse_cnn_block_forward.2} parent=0 // loop_footer
    %s15 = sadd.s32 1, %s11
  $region7: #{sparse_cnn_block_forward.2} parent=0 // loop_footer_branch
    %10 = sbr.rel target = $region3
  $region8: #{sparse_cnn_block_forward.2} parent=0 // loop_exit
    _

// kernel: sparse_cnn_block_forward.3
$region0: #{sparse_cnn_block_forward.3}
  #allocation0 [shape = 'u32[]', space=smem, size = 0x4, offset = 0x4, fixed_abs, tag = 'smem constant byte address 0x4 - core index']
  #allocation1 [shape = 'u32[72,128]{1,0:T(1,128)}', space=vmem, size = 0x9000, scoped, tag = 'internal scratch']
  %s0 = inlined_call_operand.vmem [shape: f32[32,128], index: 0, kind: input, shape index: {}]
  %s1 = inlined_call_operand.vmem [shape: f32[1,128], index: 1, kind: input, shape index: {}]
  %s2 = inlined_call_operand.vmem [shape: f32[1,128], index: 2, kind: input, shape index: {}]
  %s3 = inlined_call_operand.vmem [shape: f32[32,128], index: 3, kind: output, shape index: {}]
  %s4 = sld [smem:[#allocation0]]
  $region45: #{sparse_cnn_block_forward.3} parent=0
    _
  %s6 = ssub.s32 1, %s4
  %s7 = scalar_select 0, %s6, %s4
  loop: start=0, step=1, limit=6
  $region2: #{sparse_cnn_block_forward.3} parent=0 // loop_pre_header
    _
  $region3: #{sparse_cnn_block_forward.3} parent=0 // loop_header
    %s9 = sphi 0, %s13
    %p10 = scmp.ge.s32.totalorder %s9, 6
    %s19 = sphi 0, %s21
    %s22 = sphi 0, %s19
    %s23 = sphi 0, %s22
    %s39 = sphi 0, %s23
    %s43 = sphi 0, %s43
    %s45 = sphi 0, %s43
    %s46 = sphi 0, %s45
    %s60 = sphi 0, %s46
    %s64 = sphi 0, %s64
    %s66 = sphi 0, %s64
    %s67 = sphi 0, %s66
    %s81 = sphi 0, %s67
    %s87 = sphi 0, %s89
    %s90 = sphi 0, %s87
    %s91 = sphi 0, %s90
    %s107 = sphi 0, %s91
  $region4: #{sparse_cnn_block_forward.3} parent=0 // loop_header_branch
    %12 = sbr.rel (%p10) target = $region8
  $region5: #{sparse_cnn_block_forward.3} parent=0 // loop_body
    %s14 = ssub.s32 %s9, 1
    %s15 = ssub.s32 %s9, 2
    %s16 = sadd.s32 %s9, 1
    %s17 = ssub.s32 %s9, %s16
    %p18 = scmp.eq.s32.totalorder %s17, 0
    %s20 = sadd.s32 %s19, 1
    %s21 = scalar_select %p18, %s19, %s20
    %p24 = pneg %p18
    %p25 = scmp.eq.s32.totalorder %s9, 3
    %p26 = por %p24, %p25
    %p27 = scmp.ne.s32.totalorder %s19, %s22
    %p28 = scmp.eq.s32.totalorder %s9, 0
    %p29 = por %p27, %p28
    %p30 = scmp.ne.s32.totalorder %s19, %s22
    %p31 = scmp.eq.s32.totalorder %s14, 3
    %p32 = por %p30, %p31
    %p33 = scmp.ne.s32.totalorder %s22, %s23
    %p34 = scmp.eq.s32.totalorder %s14, 0
    %p35 = por %p33, %p34
    %p36 = scmp.ne.s32.totalorder %s22, %s23
    %p37 = scmp.eq.s32.totalorder %s15, 3
    %p38 = por %p36, %p37
    %p40 = scmp.ne.s32.totalorder %s23, %s39
    %p41 = scmp.eq.s32.totalorder %s15, 0
    %p42 = por %p40, %p41
    %s44 = sadd.s32 %s43, 1
    %p47 = scmp.eq.s32.totalorder %s9, 3
    %p48 = scmp.ne.s32.totalorder %s43, %s45
    %p49 = scmp.eq.s32.totalorder %s9, 0
    %p50 = por %p48, %p49
    %p51 = scmp.ne.s32.totalorder %s43, %s45
    %p52 = scmp.eq.s32.totalorder %s14, 3
    %p53 = por %p51, %p52
    %p54 = scmp.ne.s32.totalorder %s45, %s46
    %p55 = scmp.eq.s32.totalorder %s14, 0
    %p56 = por %p54, %p55
    %p57 = scmp.ne.s32.totalorder %s45, %s46
    %p58 = scmp.eq.s32.totalorder %s15, 3
    %p59 = por %p57, %p58
    %p61 = scmp.ne.s32.totalorder %s46, %s60
    %p62 = scmp.eq.s32.totalorder %s15, 0
    %p63 = por %p61, %p62
    %s65 = sadd.s32 %s64, 1
    %p68 = scmp.eq.s32.totalorder %s9, 3
    %p69 = scmp.ne.s32.totalorder %s64, %s66
    %p70 = scmp.eq.s32.totalorder %s9, 0
    %p71 = por %p69, %p70
    %p72 = scmp.ne.s32.totalorder %s64, %s66
    %p73 = scmp.eq.s32.totalorder %s14, 3
    %p74 = por %p72, %p73
    %p75 = scmp.ne.s32.totalorder %s66, %s67
    %p76 = scmp.eq.s32.totalorder %s14, 0
    %p77 = por %p75, %p76
    %p78 = scmp.ne.s32.totalorder %s66, %s67
    %p79 = scmp.eq.s32.totalorder %s15, 3
    %p80 = por %p78, %p79
    %p82 = scmp.ne.s32.totalorder %s67, %s81
    %p83 = scmp.eq.s32.totalorder %s15, 0
    %p84 = por %p82, %p83
    %s85 = ssub.s32 %s9, %s16
    %p86 = scmp.eq.s32.totalorder %s85, 0
    %s88 = sadd.s32 %s87, 1
    %s89 = scalar_select %p86, %s87, %s88
    %p92 = pneg %p86
    %p93 = scmp.eq.s32.totalorder %s9, 3
    %p94 = por %p92, %p93
    %p95 = scmp.ne.s32.totalorder %s87, %s90
    %p96 = scmp.eq.s32.totalorder %s9, 0
    %p97 = por %p95, %p96
    %p98 = scmp.ne.s32.totalorder %s87, %s90
    %p99 = scmp.eq.s32.totalorder %s14, 3
    %p100 = por %p98, %p99
    %p101 = scmp.ne.s32.totalorder %s90, %s91
    %p102 = scmp.eq.s32.totalorder %s14, 0
    %p103 = por %p101, %p102
    %p104 = scmp.ne.s32.totalorder %s90, %s91
    %p105 = scmp.eq.s32.totalorder %s15, 3
    %p106 = por %p104, %p105
    %p108 = scmp.ne.s32.totalorder %s91, %s107
    %p109 = scmp.eq.s32.totalorder %s15, 0
    %p110 = por %p108, %p109
    %p111 = scmp.le.s32.totalorder 1, %s9
    %p112 = scmp.lt.s32.totalorder %s9, 5
    %p113 = pnand %p111, %p112
    %p114 = pneg %p113
    // Predicated region
    $region9: #{sparse_cnn_block_forward.3} parent=5 // pred_check
      _
    $region10: #{sparse_cnn_block_forward.3} parent=5 // pred_check_branch
      %116 = sbr.rel (%p113) target = $region12
    $region11: #{sparse_cnn_block_forward.3} parent=5 // pred_region
      %s117 = ssub.s32 %s9, 1
      // Predicated region
      $region13: #{sparse_cnn_block_forward.3} parent=11 // pred_check
        %p118 = pneg %p56
      $region14: #{sparse_cnn_block_forward.3} parent=11 // pred_check_branch
        %120 = sbr.rel (%p118) target = $region16
      $region15: #{sparse_cnn_block_forward.3} parent=11 // pred_region
        _
      $region16: #{sparse_cnn_block_forward.3} parent=11 // pred_fallthru
        _
      // Predicated region
      $region17: #{sparse_cnn_block_forward.3} parent=11 // pred_check
        %p121 = pneg %p77
      $region18: #{sparse_cnn_block_forward.3} parent=11 // pred_check_branch
        %123 = sbr.rel (%p121) target = $region20
      $region19: #{sparse_cnn_block_forward.3} parent=11 // pred_region
        _
      $region20: #{sparse_cnn_block_forward.3} parent=11 // pred_fallthru
        _
    $region12: #{sparse_cnn_block_forward.3} parent=5 // pred_fallthru
      _
    %p124 = scmp.lt.s32.totalorder %s9, 4
    // Predicated region
    $region21: #{sparse_cnn_block_forward.3} parent=5 // pred_check
      %p125 = pneg %p124
    $region22: #{sparse_cnn_block_forward.3} parent=5 // pred_check_branch
      %127 = sbr.rel (%p125) target = $region24
    $region23: #{sparse_cnn_block_forward.3} parent=5 // pred_region
      // Predicated region
      $region25: #{sparse_cnn_block_forward.3} parent=23 // pred_check
        %p128 = pneg %p29
      $region26: #{sparse_cnn_block_forward.3} parent=23 // pred_check_branch
        %130 = sbr.rel (%p128) target = $region28
      $region27: #{sparse_cnn_block_forward.3} parent=23 // pred_region
        %p131 = scmp.lt.s32.totalorder %s9, 3
        %s132 = scalar_select %p131, %s9, 3
        %s133 = smul.addr %s132, 8
        %s134 = scalar_lea.vmem %s0, %s133
      $region28: #{sparse_cnn_block_forward.3} parent=23 // pred_fallthru
        _
    $region24: #{sparse_cnn_block_forward.3} parent=5 // pred_fallthru
      _
    %p135 = scmp.le.s32.totalorder 1, %s9
    %p136 = scmp.lt.s32.totalorder %s9, 5
    %p137 = pnand %p135, %p136
    %p138 = pneg %p137
    // Predicated region
    $region29: #{sparse_cnn_block_forward.3} parent=5 // pred_check
      _
    $region30: #{sparse_cnn_block_forward.3} parent=5 // pred_check_branch
      %140 = sbr.rel (%p137) target = $region32
    $region31: #{sparse_cnn_block_forward.3} parent=5 // pred_region
      %s141 = ssub.s32 %s9, 1
      %p142 = scmp.lt.s32.totalorder %s14, 3
      %s143 = scalar_select %p142, %s14, 3
      %s144 = smul.addr %s143, 8
      %s145 = scalar_lea.vmem %s0, %s144
      %p146 = pneg %p35
      %p147 = pneg %p32
      %p148 = pneg %p56
      %p149 = pneg %p53
      %p150 = pneg %p77
      %p151 = pneg %p74
      %p152 = pneg %p103
      %p153 = pneg %p100
      %p154 = scmp.lt.s32.totalorder %s14, 3
      %s155 = scalar_select %p154, %s14, 3
      %s156 = smul.addr %s155, 8
      %s157 = scalar_lea.vmem %s3, %s156
      %p158 = scmp.lt.s32.totalorder %s14, 3
      %s159 = scalar_select %p158, %s14, 3
      %s160 = smul.addr %s159, 8
      %s161 = scalar_lea.vmem %s0, %s160
      %p162 = scmp.lt.s32.totalorder %s14, 3
      %s163 = scalar_select %p162, %s14, 3
      %s164 = smul.addr %s163, 8
      %s165 = scalar_lea.vmem %s3, %s164
      %v166 = vld [vmem:[%s161] sm:$0xff]
      %v167 = vld [vmem:[%s1] sm:$0x1]
      %v169 = vperm.slane %v167, 0
      %v171 = vmul.f32 %v166, %v169
      %v172 = vld [vmem:[%s2] sm:$0x1]
      %v174 = vperm.slane %v172, 0
      %v176 = vadd.f32 %v171, %v174
      %v177 = vmax.f32 %v176, 0.0
      %178 = vst [vmem:[%s165] sm:$0xff] %v177
      %p179 = scmp.lt.s32.totalorder %s14, 3
      %s180 = scalar_select %p179, %s14, 3
      %s181 = smul.addr %s180, 8
      %s182 = scalar_lea.vmem %s3, %s181
      // Predicated region
      $region33: #{sparse_cnn_block_forward.3} parent=31 // pred_check
        %p183 = pneg %p100
      $region34: #{sparse_cnn_block_forward.3} parent=31 // pred_check_branch
        %185 = sbr.rel (%p183) target = $region36
      $region35: #{sparse_cnn_block_forward.3} parent=31 // pred_region
        _
      $region36: #{sparse_cnn_block_forward.3} parent=31 // pred_fallthru
        _
    $region32: #{sparse_cnn_block_forward.3} parent=5 // pred_fallthru
      _
    %p186 = scmp.le.s32.totalorder 2, %s9
    // Predicated region
    $region37: #{sparse_cnn_block_forward.3} parent=5 // pred_check
      %p187 = pneg %p186
    $region38: #{sparse_cnn_block_forward.3} parent=5 // pred_check_branch
      %189 = sbr.rel (%p187) target = $region40
    $region39: #{sparse_cnn_block_forward.3} parent=5 // pred_region
      %s190 = ssub.s32 %s9, 2
      // Predicated region
      $region41: #{sparse_cnn_block_forward.3} parent=39 // pred_check
        %p191 = pneg %p106
      $region42: #{sparse_cnn_block_forward.3} parent=39 // pred_check_branch
        %193 = sbr.rel (%p191) target = $region44
      $region43: #{sparse_cnn_block_forward.3} parent=39 // pred_region
        %p194 = scmp.lt.s32.totalorder %s15, 3
        %s195 = scalar_select %p194, %s15, 3
        %s196 = smul.addr %s195, 8
        %s197 = scalar_lea.vmem %s3, %s196
      $region44: #{sparse_cnn_block_forward.3} parent=39 // pred_fallthru
        _
    $region40: #{sparse_cnn_block_forward.3} parent=5 // pred_fallthru
      _
  $region6: #{sparse_cnn_block_forward.3} parent=0 // loop_footer
    %s13 = sadd.s32 1, %s9
  $region7: #{sparse_cnn_block_forward.3} parent=0 // loop_footer_branch
    %8 = sbr.rel target = $region3
  $region8: #{sparse_cnn_block_forward.3} parent=0 // loop_exit
    _

</llo_original>
